<compile_context>
chip_gen: v5e
topology: v5e:2x2
jax: 0.10.0
libtpu: 0.0.40
codegen_flags: <defaults>
</compile_context>

<pallas_src>
import jax
import jax.numpy as jnp
from jax.experimental import pallas as pl
from jax.experimental.pallas import tpu as pltpu


def _rope_precalc(max_seq: int, embed_dim: int, theta: float = 10000.0):
    """Equivalent of RoPE.pre_calc, returning cos/sin tables (S, D//2)."""
    theta_numerator = jnp.arange(0, embed_dim, 2, dtype=jnp.float32)
    inv_freq = 1.0 / (theta ** (theta_numerator / embed_dim))        # (D/2,)
    position = jnp.arange(max_seq, dtype=jnp.float32)                # (S,)
    freqs = jnp.outer(position, inv_freq)                            # (S, D/2)
    return jnp.cos(freqs), jnp.sin(freqs)


def _rope_kernel(x_ref, cos_ref, sina_ref, sinb_ref, o_ref):
    # x_ref / o_ref: (TS, D) interleaved block (batch dim squeezed away).
    # cos_ref / sina_ref / sinb_ref: (TS, D) f32 tables, signs/zeros baked in.
    x = x_ref[...].astype(jnp.float32)
    # x_next[i] = x[i+1], x_prev[i] = x[i-1] (wrap-around lanes hit zero coeffs)
    x_next = jnp.roll(x, shift=-1, axis=-1)
    x_prev = jnp.roll(x, shift=1, axis=-1)
    out = x * cos_ref[...] + x_next * sina_ref[...] + x_prev * sinb_ref[...]
    o_ref[...] = out.astype(o_ref.dtype)


def _choose_seq_tile(S: int, D: int, itemsize: int) -> int:
    """Largest sequence tile that divides S, respects sublane granularity, and
    keeps the double-buffered pipeline footprint ~<= 16 MiB."""
    sub = 16 if itemsize < 4 else 8
    # Per (TS*D) element: (x_in + out) * 2 buffers * itemsize
    #                   + 3 tables * 2 buffers * 4B (f32).
    per_elem = 2 * 2 * itemsize + 3 * 2 * 4
    budget = 16 * 1024 * 1024
    max_ts = max(sub, budget // (per_elem * max(D, 1)))
    if S <= max_ts:
        return S
    ts = (max_ts // sub) * sub
    while ts >= sub:
        if S % ts == 0:
            return ts
        ts -= sub
    return S  # fallback: whole sequence (full-extent block dims always legal)


def rope_forward(x: jax.Array, cos: jax.Array, sin: jax.Array) -> jax.Array:
    """x: (B, S, D) interleaved, D even, S == max_seq. cos/sin: (S, D//2)."""
    B, S, D = x.shape
    Dh = D // 2
    assert D % 2 == 0
    assert cos.shape == (S, Dh) and sin.shape == (S, Dh)
    # TODO(synk): no position-offset support (S must equal max_seq), mirroring
    # the PyTorch module's broadcast requirement.

    # Pre-expand the (small) tables to interleaved layout with zeros and signs
    # baked in; in production these would be precomputed once, like the
    # module's registered buffer.
    zeros = jnp.zeros_like(sin)
    cos_i = jnp.stack([cos, cos], axis=-1).reshape(S, D).astype(jnp.float32)
    sin_a = jnp.stack([-sin, zeros], axis=-1).reshape(S, D).astype(jnp.float32)
    sin_b = jnp.stack([zeros, sin], axis=-1).reshape(S, D).astype(jnp.float32)

    TS = _choose_seq_tile(S, D, x.dtype.itemsize)
    num_s = S // TS if S % TS == 0 else 1
    if S % TS != 0:
        TS = S

    x_spec = pl.BlockSpec((None, TS, D), lambda s, b: (b, s, 0))
    tab_spec = pl.BlockSpec((TS, D), lambda s, b: (s, 0))
    out_spec = pl.BlockSpec((None, TS, D), lambda s, b: (b, s, 0))

    return pl.pallas_call(
        _rope_kernel,
        out_shape=jax.ShapeDtypeStruct((B, S, D), x.dtype),
        grid=(num_s, B),  # batch fastest -> tables re-DMA only when S tile changes
        in_specs=[x_spec, tab_spec, tab_spec, tab_spec],
        out_specs=out_spec,
        compiler_params=pltpu.CompilerParams(
            dimension_semantics=("parallel", "parallel"),
            vmem_limit_bytes=32 * 1024 * 1024,
        ),
    )(x, cos_i, sin_a, sin_b)


def rope_reference(x, cos, sin):
    """Pure-JAX reference mirroring the PyTorch complex-multiply semantics."""
    B, S, D = x.shape
    xp = x.reshape(B, S, D // 2, 2)
    xe, xo = xp[..., 0], xp[..., 1]
    oe = xe * cos - xo * sin
    oo = xe * sin + xo * cos
    return jnp.stack([oe, oo], axis=-1).reshape(B, S, D)


if __name__ == "__main__":
    max_seq = 8
    embed_dim = 128   # lane-dense last dim (multiple of 128)
    batch = 2

    key = jax.random.PRNGKey(0)
    x = jax.random.normal(key, (batch, max_seq, embed_dim), dtype=jnp.float32)

    cos, sin = _rope_precalc(max_seq, embed_dim, theta=10000.0)

    out = rope_forward(x, cos, sin)
    out = jax.block_until_ready(out)

    ref = rope_reference(x, cos, sin)
    assert out.shape == x.shape
    assert jnp.allclose(out, ref, atol=1e-5, rtol=1e-5), float(
        jnp.max(jnp.abs(out - ref)))

    print("KERNEL_OK")
</pallas_src>

<mosaic_0001>
module attributes {stable_mosaic.version = 11 : i64} {
  func.func @_rope_kernel(%arg0: i32, %arg1: i32, %arg2: memref<1x8x128xf32, #tpu.memory_space<vmem>>, %arg3: memref<8x128xf32, #tpu.memory_space<vmem>>, %arg4: memref<8x128xf32, #tpu.memory_space<vmem>>, %arg5: memref<8x128xf32, #tpu.memory_space<vmem>>, %arg6: memref<1x8x128xf32, #tpu.memory_space<vmem>>) attributes {dimension_semantics = [#tpu.dimension_semantics<parallel>, #tpu.dimension_semantics<parallel>], iteration_bounds = array<i64: 1, 2>, scalar_prefetch = 0 : i64, scratch_operands = 0 : i64, tpu.core_type = #tpu.core_type<tc>, window_params = [{transform_indices = @transform_0, window_bounds = array<i64: 1, 8, 128>}, {transform_indices = @transform_1, window_bounds = array<i64: 8, 128>}, {transform_indices = @transform_2, window_bounds = array<i64: 8, 128>}, {transform_indices = @transform_3, window_bounds = array<i64: 8, 128>}, {transform_indices = @transform_4, window_bounds = array<i64: 1, 8, 128>}]} {
    %c0 = arith.constant 0 : index
    %c0_0 = arith.constant 0 : index
    %c0_1 = arith.constant 0 : index
    %0 = vector.load %arg2[%c0, %c0_0, %c0_1] : memref<1x8x128xf32, #tpu.memory_space<vmem>>, vector<1x8x128xf32>
    %1 = vector.shape_cast %0 : vector<1x8x128xf32> to vector<8x128xf32>
    %2 = vector.extract_strided_slice %1 {offsets = [0, 1], sizes = [8, 127], strides = [1, 1]} : vector<8x128xf32> to vector<8x127xf32>
    %3 = vector.extract_strided_slice %1 {offsets = [0, 0], sizes = [8, 1], strides = [1, 1]} : vector<8x128xf32> to vector<8x1xf32>
    %4 = tpu.concatenate %2, %3 in 1 : vector<8x127xf32>, vector<8x1xf32> -> vector<8x128xf32>
    %5 = vector.extract_strided_slice %1 {offsets = [0, 127], sizes = [8, 1], strides = [1, 1]} : vector<8x128xf32> to vector<8x1xf32>
    %6 = vector.extract_strided_slice %1 {offsets = [0, 0], sizes = [8, 127], strides = [1, 1]} : vector<8x128xf32> to vector<8x127xf32>
    %7 = tpu.concatenate %5, %6 in 1 : vector<8x1xf32>, vector<8x127xf32> -> vector<8x128xf32>
    %c0_2 = arith.constant 0 : index
    %c0_3 = arith.constant 0 : index
    %8 = vector.load %arg3[%c0_2, %c0_3] : memref<8x128xf32, #tpu.memory_space<vmem>>, vector<8x128xf32>
    %9 = arith.mulf %1, %8 : vector<8x128xf32>
    %c0_4 = arith.constant 0 : index
    %c0_5 = arith.constant 0 : index
    %10 = vector.load %arg4[%c0_4, %c0_5] : memref<8x128xf32, #tpu.memory_space<vmem>>, vector<8x128xf32>
    %11 = arith.mulf %4, %10 : vector<8x128xf32>
    %12 = arith.addf %9, %11 : vector<8x128xf32>
    %c0_6 = arith.constant 0 : index
    %c0_7 = arith.constant 0 : index
    %13 = vector.load %arg5[%c0_6, %c0_7] : memref<8x128xf32, #tpu.memory_space<vmem>>, vector<8x128xf32>
    %14 = arith.mulf %7, %13 : vector<8x128xf32>
    %15 = arith.addf %12, %14 : vector<8x128xf32>
    %c0_8 = arith.constant 0 : index
    %c0_9 = arith.constant 0 : index
    %c0_10 = arith.constant 0 : index
    %16 = vector.load %arg6[%c0_8, %c0_9, %c0_10] : memref<1x8x128xf32, #tpu.memory_space<vmem>>, vector<1x8x128xf32>
    %17 = vector.shape_cast %16 : vector<1x8x128xf32> to vector<8x128xf32>
    %18 = vector.shape_cast %15 : vector<8x128xf32> to vector<1x8x128xf32>
    tpu.vector_store %arg6[%c0_8, %c0_9, %c0_10], %18 {strides = array<i32>} : memref<1x8x128xf32, #tpu.memory_space<vmem>>, vector<1x8x128xf32>,
    return
  }
  func.func @transform_0(%arg0: i32, %arg1: i32) -> (i32, i32, i32) {
    %c0_i32 = arith.constant 0 : i32
    %c0_i32_0 = arith.constant 0 : i32
    return %arg1, %arg0, %c0_i32 : i32, i32, i32
  }
  func.func @transform_1(%arg0: i32, %arg1: i32) -> (i32, i32) {
    %c0_i32 = arith.constant 0 : i32
    %c0_i32_0 = arith.constant 0 : i32
    return %arg0, %c0_i32 : i32, i32
  }
  func.func @transform_2(%arg0: i32, %arg1: i32) -> (i32, i32) {
    %c0_i32 = arith.constant 0 : i32
    %c0_i32_0 = arith.constant 0 : i32
    return %arg0, %c0_i32 : i32, i32
  }
  func.func @transform_3(%arg0: i32, %arg1: i32) -> (i32, i32) {
    %c0_i32 = arith.constant 0 : i32
    %c0_i32_0 = arith.constant 0 : i32
    return %arg0, %c0_i32 : i32, i32
  }
  func.func @transform_4(%arg0: i32, %arg1: i32) -> (i32, i32, i32) {
    %c0_i32 = arith.constant 0 : i32
    %c0_i32_0 = arith.constant 0 : i32
    return %arg1, %arg0, %c0_i32 : i32, i32, i32
  }
}

</mosaic_0001>

<llo_original>
// kernel: tpu_custom_call.1
$region0: #{tpu_custom_call.1}
  #allocation0 [shape = 'u32[]', space=smem, size = 0x4, offset = 0x4, fixed_abs, tag = 'smem constant byte address 0x4 - core index']
  #allocation1 [shape = 'u32[72,128]{1,0:T(1,128)}', space=vmem, size = 0x9000, scoped, tag = 'internal scratch']
  %s0 = inlined_call_operand.hbm [shape: f32[2,8,128], index: 0, kind: input, shape index: {}]
  %s1 = inlined_call_operand.hbm [shape: f32[8,128], index: 1, kind: input, shape index: {}]
  %s2 = inlined_call_operand.hbm [shape: f32[8,128], index: 2, kind: input, shape index: {}]
  %s3 = inlined_call_operand.hbm [shape: f32[8,128], index: 3, kind: input, shape index: {}]
  %s4 = inlined_call_operand.hbm [shape: f32[2,8,128], index: 4, kind: output, shape index: {}]
  %s5 = sld [smem:[#allocation0]]
  $region65: #{tpu_custom_call.1} parent=0
    _
  %s7 = ssub.s32 1, %s5
  %s8 = scalar_select 0, %s7, %s5
  $region1: #{tpu_custom_call.1} parent=0
    #allocation2 [shape = 'u8[8192]{0}', space=vmem, size = 0x2000, scoped, tag = 'input window, operand 0']
    #allocation3 [shape = 's32[2]{0}', space=sflag, size = 0x8, scoped, tag = 'scoped memory for tpu_custom_call.1']
    #allocation4 [shape = 's32[2]{0}', space=sflag, size = 0x8, scoped, tag = 'scoped memory for tpu_custom_call.1']
    #allocation5 [shape = 'u8[4096]{0}', space=vmem, size = 0x1000, scoped, tag = 'input window, operand 1, single buffered']
    #allocation6 [shape = 's32[1]{0}', space=sflag, size = 0x4, scoped, tag = 'scoped memory for tpu_custom_call.1']
    #allocation7 [shape = 'u8[4096]{0}', space=vmem, size = 0x1000, scoped, tag = 'input window, operand 2, single buffered']
    #allocation8 [shape = 'u8[4096]{0}', space=vmem, size = 0x1000, scoped, tag = 'input window, operand 3, single buffered']
    #allocation9 [shape = 's32[1]{0}', space=sflag, size = 0x4, scoped, tag = 'scoped memory for tpu_custom_call.1']
    #allocation10 [shape = 'u8[8192]{0}', space=vmem, size = 0x2000, scoped, tag = 'output window, operand 0']
    %9 = vsyncpa [#allocation3], 0
    %s10 = scalar_lea.sflag [#allocation3], 1
    %11 = vsyncpa %s10, 0
    %12 = vsyncpa [#allocation6], 0
    %13 = vsyncpa [#allocation9], 0
    %14 = vsyncpa [#allocation4], 0
    %s15 = scalar_lea.sflag [#allocation4], 1
    %16 = vsyncpa %s15, 0
    loop: start=0, step=1, limit=4
    $region2: #{tpu_custom_call.1} parent=1 // loop_pre_header
      _
    $region3: #{tpu_custom_call.1} parent=1 // loop_header
      %s18 = sphi 0, %s22
      %p19 = scmp.ge.s32.totalorder %s18, 4
      %s25 = sphi 0, %s37
      %s26 = sphi 0, %s33
      %s27 = sphi 0, %s25
      %s28 = sphi 0, %s26
      %s29 = sphi 0, %s27
      %s30 = sphi 0, %s28
      %s42 = sphi 0, %s44
      %s45 = sphi 0, %s42
      %s46 = sphi 0, %s45
      %s62 = sphi 0, %s46
      %s68 = sphi 0, %s70
      %s71 = sphi 0, %s68
      %s72 = sphi 0, %s71
      %s88 = sphi 0, %s72
      %s94 = sphi 0, %s96
      %s97 = sphi 0, %s94
      %s98 = sphi 0, %s97
      %s114 = sphi 0, %s98
      %s120 = sphi 0, %s122
      %s123 = sphi 0, %s120
      %s124 = sphi 0, %s123
      %s140 = sphi 0, %s124
      %s148 = sphi 0, %s150
      %s151 = sphi 0, %s148
      %s152 = sphi 0, %s151
      %s168 = sphi 0, %s152
    $region4: #{tpu_custom_call.1} parent=1 // loop_header_branch
      %21 = sbr.rel (%p19) target = $region8
    $region5: #{tpu_custom_call.1} parent=1 // loop_body
      %s23 = ssub.s32 %s18, 1
      %s24 = ssub.s32 %s18, 2
      %s31 = sadd.s32 1, %s26
      %p32 = scmp.ge.s32.totalorder %s31, 2
      %s33 = scalar_select %p32, 0, %s31
      %s34 = sadd.s32 1, %s25
      %s35 = scalar_select %p32, %s34, %s25
      %p36 = scmp.ge.s32.totalorder %s35, 1
      %s37 = scalar_select %p36, 0, %s35
      %s38 = ssub.s32 %s26, %s33
      %s39 = ssub.s32 %s25, %s37
      %s40 = sor.u32 %s38, %s39
      %p41 = scmp.eq.s32.totalorder %s40, 0
      %s43 = sadd.s32 %s42, 1
      %s44 = scalar_select %p41, %s42, %s43
      %p47 = pneg %p41
      %p48 = scmp.eq.s32.totalorder %s18, 1
      %p49 = por %p47, %p48
      %p50 = scmp.ne.s32.totalorder %s42, %s45
      %p51 = scmp.eq.s32.totalorder %s18, 0
      %p52 = por %p50, %p51
      %p53 = scmp.ne.s32.totalorder %s42, %s45
      %p54 = scmp.eq.s32.totalorder %s23, 1
      %p55 = por %p53, %p54
      %p56 = scmp.ne.s32.totalorder %s45, %s46
      %p57 = scmp.eq.s32.totalorder %s23, 0
      %p58 = por %p56, %p57
      %p59 = scmp.ne.s32.totalorder %s45, %s46
      %p60 = scmp.eq.s32.totalorder %s24, 1
      %p61 = por %p59, %p60
      %p63 = scmp.ne.s32.totalorder %s46, %s62
      %p64 = scmp.eq.s32.totalorder %s24, 0
      %p65 = por %p63, %p64
      %s66 = ssub.s32 %s25, %s37
      %p67 = scmp.eq.s32.totalorder %s66, 0
      %s69 = sadd.s32 %s68, 1
      %s70 = scalar_select %p67, %s68, %s69
      %p73 = pneg %p67
      %p74 = scmp.eq.s32.totalorder %s18, 1
      %p75 = por %p73, %p74
      %p76 = scmp.ne.s32.totalorder %s68, %s71
      %p77 = scmp.eq.s32.totalorder %s18, 0
      %p78 = por %p76, %p77
      %p79 = scmp.ne.s32.totalorder %s68, %s71
      %p80 = scmp.eq.s32.totalorder %s23, 1
      %p81 = por %p79, %p80
      %p82 = scmp.ne.s32.totalorder %s71, %s72
      %p83 = scmp.eq.s32.totalorder %s23, 0
      %p84 = por %p82, %p83
      %p85 = scmp.ne.s32.totalorder %s71, %s72
      %p86 = scmp.eq.s32.totalorder %s24, 1
      %p87 = por %p85, %p86
      %p89 = scmp.ne.s32.totalorder %s72, %s88
      %p90 = scmp.eq.s32.totalorder %s24, 0
      %p91 = por %p89, %p90
      %s92 = ssub.s32 %s25, %s37
      %p93 = scmp.eq.s32.totalorder %s92, 0
      %s95 = sadd.s32 %s94, 1
      %s96 = scalar_select %p93, %s94, %s95
      %p99 = pneg %p93
      %p100 = scmp.eq.s32.totalorder %s18, 1
      %p101 = por %p99, %p100
      %p102 = scmp.ne.s32.totalorder %s94, %s97
      %p103 = scmp.eq.s32.totalorder %s18, 0
      %p104 = por %p102, %p103
      %p105 = scmp.ne.s32.totalorder %s94, %s97
      %p106 = scmp.eq.s32.totalorder %s23, 1
      %p107 = por %p105, %p106
      %p108 = scmp.ne.s32.totalorder %s97, %s98
      %p109 = scmp.eq.s32.totalorder %s23, 0
      %p110 = por %p108, %p109
      %p111 = scmp.ne.s32.totalorder %s97, %s98
      %p112 = scmp.eq.s32.totalorder %s24, 1
      %p113 = por %p111, %p112
      %p115 = scmp.ne.s32.totalorder %s98, %s114
      %p116 = scmp.eq.s32.totalorder %s24, 0
      %p117 = por %p115, %p116
      %s118 = ssub.s32 %s25, %s37
      %p119 = scmp.eq.s32.totalorder %s118, 0
      %s121 = sadd.s32 %s120, 1
      %s122 = scalar_select %p119, %s120, %s121
      %p125 = pneg %p119
      %p126 = scmp.eq.s32.totalorder %s18, 1
      %p127 = por %p125, %p126
      %p128 = scmp.ne.s32.totalorder %s120, %s123
      %p129 = scmp.eq.s32.totalorder %s18, 0
      %p130 = por %p128, %p129
      %p131 = scmp.ne.s32.totalorder %s120, %s123
      %p132 = scmp.eq.s32.totalorder %s23, 1
      %p133 = por %p131, %p132
      %p134 = scmp.ne.s32.totalorder %s123, %s124
      %p135 = scmp.eq.s32.totalorder %s23, 0
      %p136 = por %p134, %p135
      %p137 = scmp.ne.s32.totalorder %s123, %s124
      %p138 = scmp.eq.s32.totalorder %s24, 1
      %p139 = por %p137, %p138
      %p141 = scmp.ne.s32.totalorder %s124, %s140
      %p142 = scmp.eq.s32.totalorder %s24, 0
      %p143 = por %p141, %p142
      %s144 = ssub.s32 %s26, %s33
      %s145 = ssub.s32 %s25, %s37
      %s146 = sor.u32 %s144, %s145
      %p147 = scmp.eq.s32.totalorder %s146, 0
      %s149 = sadd.s32 %s148, 1
      %s150 = scalar_select %p147, %s148, %s149
      %p153 = pneg %p147
      %p154 = scmp.eq.s32.totalorder %s18, 1
      %p155 = por %p153, %p154
      %p156 = scmp.ne.s32.totalorder %s148, %s151
      %p157 = scmp.eq.s32.totalorder %s18, 0
      %p158 = por %p156, %p157
      %p159 = scmp.ne.s32.totalorder %s148, %s151
      %p160 = scmp.eq.s32.totalorder %s23, 1
      %p161 = por %p159, %p160
      %p162 = scmp.ne.s32.totalorder %s151, %s152
      %p163 = scmp.eq.s32.totalorder %s23, 0
      %p164 = por %p162, %p163
      %p165 = scmp.ne.s32.totalorder %s151, %s152
      %p166 = scmp.eq.s32.totalorder %s24, 1
      %p167 = por %p165, %p166
      %p169 = scmp.ne.s32.totalorder %s152, %s168
      %p170 = scmp.eq.s32.totalorder %s24, 0
      %p171 = por %p169, %p170
      %p172 = scmp.le.s32.totalorder 1, %s18
      %p173 = scmp.lt.s32.totalorder %s18, 3
      %p174 = pnand %p172, %p173
      %p175 = pneg %p174
      // Predicated region
      $region9: #{tpu_custom_call.1} parent=5 // pred_check
        _
      $region10: #{tpu_custom_call.1} parent=5 // pred_check_branch
        %177 = sbr.rel (%p174) target = $region12
      $region11: #{tpu_custom_call.1} parent=5 // pred_region
        %s178 = ssub.s32 %s18, 1
        // Predicated region
        $region13: #{tpu_custom_call.1} parent=11 // pred_check
          %p179 = pneg %p84
        $region14: #{tpu_custom_call.1} parent=11 // pred_check_branch
          %181 = sbr.rel (%p179) target = $region16
        $region15: #{tpu_custom_call.1} parent=11 // pred_region
          %183 = vsyncadd [#allocation6], 0
          %s184 = smul.addr %s27, 8
          %s185 = scalar_lea.hbm %s1, %s184
          %s187 = sshll.u32 %s185, 4
          %s188 = int_to_ptr.hbm [resolvable:$true] %s187
          %s189 = sshll.u32 [#allocation5], 4
          %s190 = int_to_ptr.vmem [resolvable:$true] %s189
          %192 = dma.hbm_to_vmem [thread:$0]  %s188, 128, %s190, [#allocation6]
        $region16: #{tpu_custom_call.1} parent=11 // pred_fallthru
          _
        // Predicated region
        $region17: #{tpu_custom_call.1} parent=11 // pred_check
          %p193 = pneg %p110
        $region18: #{tpu_custom_call.1} parent=11 // pred_check_branch
          %195 = sbr.rel (%p193) target = $region20
        $region19: #{tpu_custom_call.1} parent=11 // pred_region
          %197 = vsyncadd [#allocation6], 0
          %s198 = smul.addr %s27, 8
          %s199 = scalar_lea.hbm %s2, %s198
          %s201 = sshll.u32 %s199, 4
          %s202 = int_to_ptr.hbm [resolvable:$true] %s201
          %s203 = sshll.u32 [#allocation7], 4
          %s204 = int_to_ptr.vmem [resolvable:$true] %s203
          %206 = dma.hbm_to_vmem [thread:$0]  %s202, 128, %s204, [#allocation6]
        $region20: #{tpu_custom_call.1} parent=11 // pred_fallthru
          _
        // Predicated region
        $region21: #{tpu_custom_call.1} parent=11 // pred_check
          %p207 = pneg %p136
        $region22: #{tpu_custom_call.1} parent=11 // pred_check_branch
          %209 = sbr.rel (%p207) target = $region24
        $region23: #{tpu_custom_call.1} parent=11 // pred_region
          %211 = vsyncadd [#allocation9], 0
          %s212 = smul.addr %s27, 8
          %s213 = scalar_lea.hbm %s3, %s212
          %s215 = sshll.u32 %s213, 4
          %s216 = int_to_ptr.hbm [resolvable:$true] %s215
          %s217 = sshll.u32 [#allocation8], 4
          %s218 = int_to_ptr.vmem [resolvable:$true] %s217
          %220 = dma.hbm_to_vmem [thread:$0]  %s216, 128, %s218, [#allocation9]
        $region24: #{tpu_custom_call.1} parent=11 // pred_fallthru
          _
      $region12: #{tpu_custom_call.1} parent=5 // pred_fallthru
        _
      %p221 = scmp.lt.s32.totalorder %s18, 2
      // Predicated region
      $region25: #{tpu_custom_call.1} parent=5 // pred_check
        %p222 = pneg %p221
      $region26: #{tpu_custom_call.1} parent=5 // pred_check_branch
        %224 = sbr.rel (%p222) target = $region28
      $region27: #{tpu_custom_call.1} parent=5 // pred_region
        // Predicated region
        $region29: #{tpu_custom_call.1} parent=27 // pred_check
          %p225 = pneg %p52
        $region30: #{tpu_custom_call.1} parent=27 // pred_check_branch
          %227 = sbr.rel (%p225) target = $region32
        $region31: #{tpu_custom_call.1} parent=27 // pred_region
          %s228 = sand.u32 %s42, 1
          %s229 = scalar_lea.sflag [#allocation3], %s228
          %s230 = sand.u32 %s42, 1
          %s231 = smul.addr %s230, 8
          %s232 = scalar_lea.vmem [#allocation2], %s231
          %234 = vsyncadd %s229, 0
          %s235 = sadd.s32 %s25, %s26
          %s236 = smul.addr %s235, 8
          %s237 = scalar_lea.hbm %s0, %s236
          %s239 = sshll.u32 %s237, 4
          %s240 = int_to_ptr.hbm [resolvable:$true] %s239
          %s241 = sshll.u32 %s232, 4
          %s242 = int_to_ptr.vmem [resolvable:$true] %s241
          %244 = dma.hbm_to_vmem [thread:$0]  %s240, 128, %s242, %s229
        $region32: #{tpu_custom_call.1} parent=27 // pred_fallthru
          _
      $region28: #{tpu_custom_call.1} parent=5 // pred_fallthru
        _
      %p245 = scmp.le.s32.totalorder 1, %s18
      %p246 = scmp.lt.s32.totalorder %s18, 3
      %p247 = pnand %p245, %p246
      %p248 = pneg %p247
      // Predicated region
      $region33: #{tpu_custom_call.1} parent=5 // pred_check
        _
      $region34: #{tpu_custom_call.1} parent=5 // pred_check_branch
        %250 = sbr.rel (%p247) target = $region36
      $region35: #{tpu_custom_call.1} parent=5 // pred_region
        %s251 = ssub.s32 %s18, 1
        %s252 = sand.u32 %s45, 1
        %s253 = scalar_lea.sflag [#allocation3], %s252
        %s254 = sand.u32 %s45, 1
        %s255 = smul.addr %s254, 8
        %s256 = scalar_lea.vmem [#allocation2], %s255
        // Predicated region
        $region37: #{tpu_custom_call.1} parent=35 // pred_check
          %p257 = pneg %p58
        $region38: #{tpu_custom_call.1} parent=35 // pred_check_branch
          %259 = sbr.rel (%p257) target = $region40
        $region39: #{tpu_custom_call.1} parent=35 // pred_region
          %261 = dma.done %s253, 128
        $region40: #{tpu_custom_call.1} parent=35 // pred_fallthru
          _
        // Predicated region
        $region41: #{tpu_custom_call.1} parent=35 // pred_check
          %p262 = pneg %p84
        $region42: #{tpu_custom_call.1} parent=35 // pred_check_branch
          %264 = sbr.rel (%p262) target = $region44
        $region43: #{tpu_custom_call.1} parent=35 // pred_region
          %266 = dma.done [#allocation6], 128
        $region44: #{tpu_custom_call.1} parent=35 // pred_fallthru
          _
        // Predicated region
        $region45: #{tpu_custom_call.1} parent=35 // pred_check
          %p267 = pneg %p110
        $region46: #{tpu_custom_call.1} parent=35 // pred_check_branch
          %269 = sbr.rel (%p267) target = $region48
        $region47: #{tpu_custom_call.1} parent=35 // pred_region
          %271 = dma.done [#allocation6], 128
        $region48: #{tpu_custom_call.1} parent=35 // pred_fallthru
          _
        // Predicated region
        $region49: #{tpu_custom_call.1} parent=35 // pred_check
          %p272 = pneg %p136
        $region50: #{tpu_custom_call.1} parent=35 // pred_check_branch
          %274 = sbr.rel (%p272) target = $region52
        $region51: #{tpu_custom_call.1} parent=35 // pred_region
          %276 = dma.done [#allocation9], 128
        $region52: #{tpu_custom_call.1} parent=35 // pred_fallthru
          _
        %s277 = sand.u32 %s45, 1
        %s278 = scalar_lea.sflag [#allocation3], %s277
        %s279 = sand.u32 %s45, 1
        %s280 = smul.addr %s279, 8
        %s281 = scalar_lea.vmem [#allocation2], %s280
        %p282 = pneg %p58
        %p283 = pneg %p55
        %p284 = pneg %p84
        %p285 = pneg %p81
        %p286 = pneg %p110
        %p287 = pneg %p107
        %p288 = pneg %p136
        %p289 = pneg %p133
        %p290 = pneg %p164
        %p291 = pneg %p161
        %s292 = sand.u32 %s151, 1
        %s293 = scalar_lea.sflag [#allocation4], %s292
        %s294 = sand.u32 %s151, 1
        %s295 = smul.addr %s294, 8
        %s296 = scalar_lea.vmem [#allocation10], %s295
        %v297 = vld [vmem:[%s256] sm:$0xff]
        %299 = vrot.lane.b32.xlu0 %v297, 127
        %v300 = vpop.permute.xlu0 %299
        %302 = vrot.lane.b32.xlu0 %v297, 1
        %v303 = vpop.permute.xlu0 %302
        %v305 = vld [vmem:[#allocation5] sm:$0xff]
        %v306 = vmul.f32 %v297, %v305
        %v307 = vld [vmem:[#allocation7] sm:$0xff]
        %v308 = vmul.f32 %v300, %v307
        %v309 = vadd.f32 %v306, %v308
        %v310 = vld [vmem:[#allocation8] sm:$0xff]
        %v311 = vmul.f32 %v303, %v310
        %v312 = vadd.f32 %v309, %v311
        %313 = vst [vmem:[%s296] sm:$0xff] %v312
        %s314 = sand.u32 %s151, 1
        %s315 = scalar_lea.sflag [#allocation4], %s314
        %s316 = sand.u32 %s151, 1
        %s317 = smul.addr %s316, 8
        %s318 = scalar_lea.vmem [#allocation10], %s317
        // Predicated region
        $region53: #{tpu_custom_call.1} parent=35 // pred_check
          %p319 = pneg %p161
        $region54: #{tpu_custom_call.1} parent=35 // pred_check_branch
          %321 = sbr.rel (%p319) target = $region56
        $region55: #{tpu_custom_call.1} parent=35 // pred_region
          %323 = vsyncadd %s315, 0
          %s324 = sadd.s32 %s27, %s28
          %s325 = smul.addr %s324, 8
          %s326 = scalar_lea.hbm %s4, %s325
          %s328 = sshll.u32 %s318, 4
          %s329 = int_to_ptr.vmem [resolvable:$true] %s328
          %s330 = sshll.u32 %s326, 4
          %s331 = int_to_ptr.hbm [resolvable:$true] %s330
          %333 = dma.vmem_to_hbm [thread:$0]  %s329, 128, %s331, %s315
        $region56: #{tpu_custom_call.1} parent=35 // pred_fallthru
          _
      $region36: #{tpu_custom_call.1} parent=5 // pred_fallthru
        _
      %p334 = scmp.le.s32.totalorder 2, %s18
      // Predicated region
      $region57: #{tpu_custom_call.1} parent=5 // pred_check
        %p335 = pneg %p334
      $region58: #{tpu_custom_call.1} parent=5 // pred_check_branch
        %337 = sbr.rel (%p335) target = $region60
      $region59: #{tpu_custom_call.1} parent=5 // pred_region
        %s338 = ssub.s32 %s18, 2
        // Predicated region
        $region61: #{tpu_custom_call.1} parent=59 // pred_check
          %p339 = pneg %p167
        $region62: #{tpu_custom_call.1} parent=59 // pred_check_branch
          %341 = sbr.rel (%p339) target = $region64
        $region63: #{tpu_custom_call.1} parent=59 // pred_region
          %s342 = sand.u32 %s152, 1
          %s343 = scalar_lea.sflag [#allocation4], %s342
          %s344 = sand.u32 %s152, 1
          %s345 = smul.addr %s344, 8
          %s346 = scalar_lea.vmem [#allocation10], %s345
          %348 = dma.done %s343, 128
        $region64: #{tpu_custom_call.1} parent=59 // pred_fallthru
          _
      $region60: #{tpu_custom_call.1} parent=5 // pred_fallthru
        _
    $region6: #{tpu_custom_call.1} parent=1 // loop_footer
      %s22 = sadd.s32 1, %s18
    $region7: #{tpu_custom_call.1} parent=1 // loop_footer_branch
      %17 = sbr.rel target = $region3
    $region8: #{tpu_custom_call.1} parent=1 // loop_exit
      _
    %349 = vsyncpa [#allocation3], 1
    %s350 = scalar_lea.sflag [#allocation3], 1
    %351 = vsyncpa %s350, 1
    %352 = vsyncpa [#allocation6], 1
    %353 = vsyncpa [#allocation9], 1
    %354 = vsyncpa [#allocation4], 1
    %s355 = scalar_lea.sflag [#allocation4], 1
    %356 = vsyncpa %s355, 1

</llo_original>
